<compile_context>
chip_gen: v5e
topology: v5e:2x2
jax: 0.10.0
libtpu: 0.0.40
codegen_flags: <defaults>
</compile_context>

<pallas_src>
import functools

import jax
import jax.numpy as jnp
from jax.experimental import pallas as pl
from jax.experimental.pallas import tpu as pltpu

HIDDEN = 100      # fixed inside the PyTorch module
LANE = 128
SUBLANE = 8


def _round_up(x, m):
    return (x + m - 1) // m * m


def _pad2d(a, rows, cols):
    r, c = a.shape
    return jnp.pad(a, ((0, rows - r), (0, cols - c)))


def _pad1d(a, n):
    return jnp.pad(a, (0, n - a.shape[0]))


# -----------------------------------------------------------------------------
# Kernels
# -----------------------------------------------------------------------------
def _residual_block(x_f32, w1, w2, b1, b2, compute_dtype):
    """x + ReLU(ReLU(x @ w1 + b1) @ w2 + b2); MXU operands in compute_dtype,
    f32 accumulation, all elementwise math in f32."""
    h = jnp.dot(x_f32.astype(compute_dtype), w1, preferred_element_type=jnp.float32)
    if b1 is not None:
        h = h + b1
    h = jnp.maximum(h, 0.0)
    y = jnp.dot(h.astype(compute_dtype), w2, preferred_element_type=jnp.float32)
    if b2 is not None:
        y = y + b2
    y = jnp.maximum(y, 0.0)
    return x_f32 + y


def _encoder_kernel(x_ref, we_ref, w1s_ref, w2s_ref, o_ref, *, n_blocks):
    # x_ref: (tm, Wp) f32; we_ref: (Wp, Hp); w1s/w2s: (n_blocks, Hp, Hp)
    cdt = we_ref.dtype
    x = x_ref[...]
    h = jnp.dot(x.astype(cdt), we_ref[...], preferred_element_type=jnp.float32)
    for i in range(n_blocks):                       # bias=False residual blocks
        h = _residual_block(h, w1s_ref[i], w2s_ref[i], None, None, cdt)
    o_ref[...] = h.astype(o_ref.dtype)


def _decoder_kernel(x_ref, w1s_ref, w2s_ref, b1s_ref, b2s_ref, wf_ref, bf_ref,
                    o_ref, *, n_blocks, apply_sigmoid):
    # x_ref: (tm, Hp) f32; w1s/w2s: (n_blocks, Hp, Hp); b1s/b2s: (n_blocks, 1, Hp)
    # wf_ref: (Hp, Wp); bf_ref: (1, Wp)
    cdt = wf_ref.dtype
    h = x_ref[...]
    for i in range(n_blocks):                       # bias=True residual blocks
        h = _residual_block(h, w1s_ref[i], w2s_ref[i], b1s_ref[i], b2s_ref[i], cdt)
    z = jnp.dot(h.astype(cdt), wf_ref[...], preferred_element_type=jnp.float32)
    z = z + bf_ref[...]
    if apply_sigmoid:
        z = 1.0 / (1.0 + jnp.exp(-z))               # Sigmoid (norm_mode='minmax')
    o_ref[...] = z.astype(o_ref.dtype)


# -----------------------------------------------------------------------------
# pallas_call wrappers
# -----------------------------------------------------------------------------
def _const_spec(shape, single_buffer):
    """BlockSpec for a grid-invariant (resident) operand."""
    index_map = lambda i: (0,) * len(shape)
    if single_buffer:
        # Resident weights/biases never change across grid steps: single buffer
        # halves their VMEM footprint (decisive on v7x's 64 MiB VMEM).
        return pl.BlockSpec(shape, index_map, pipeline_mode=pl.Buffered(1))
    return pl.BlockSpec(shape, index_map)


def _vmem_limit_bytes(const_bytes, tm, in_lanes, out_lanes, hidden_lanes):
    io = 2 * (tm * in_lanes + tm * out_lanes) * 4        # double-buffered f32 tiles
    live = 6 * tm * hidden_lanes * 4                     # in-flight f32 intermediates
    est = 2 * const_bytes + io + live + (8 << 20)        # x2 covers buffering fallback
    return int(min(max(est, 32 << 20), 64 << 20))        # clamp to v7x 64 MiB VMEM


def _encoder_call(xp, we, w1s, w2s, tm, single_buffer):
    mp, wp = xp.shape
    hp = we.shape[1]
    n_blocks = int(w1s.shape[0])
    const_bytes = sum(int(a.size) * a.dtype.itemsize for a in (we, w1s, w2s))
    kernel = functools.partial(_encoder_kernel, n_blocks=n_blocks)
    # TODO(synk): for H large enough that resident weights exceed VMEM (v7x
    # 64 MiB), stream w1/w2 in K-chunks via pltpu.emit_pipeline instead.
    return pl.pallas_call(
        kernel,
        out_shape=jax.ShapeDtypeStruct((mp, hp), jnp.float32),
        grid_spec=pltpu.PrefetchScalarGridSpec(
            num_scalar_prefetch=0,
            grid=(mp // tm,),
            in_specs=[
                pl.BlockSpec((tm, wp), lambda i: (i, 0)),          # x rows tile
                _const_spec((wp, hp), single_buffer),              # encoder Linear
                _const_spec((n_blocks, hp, hp), single_buffer),    # block W1s
                _const_spec((n_blocks, hp, hp), single_buffer),    # block W2s
            ],
            out_specs=pl.BlockSpec((tm, hp), lambda i: (i, 0)),
        ),
        compiler_params=pltpu.CompilerParams(
            dimension_semantics=("parallel",),
            vmem_limit_bytes=_vmem_limit_bytes(const_bytes, tm, wp, hp, hp),
        ),
    )(xp, we, w1s, w2s)


def _decoder_call(h, w1s, w2s, b1s, b2s, wf, bf, apply_sigmoid, tm, single_buffer):
    mp, hp = h.shape
    wp = wf.shape[1]
    n_blocks = int(w1s.shape[0])
    consts = (w1s, w2s, b1s, b2s, wf, bf)
    const_bytes = sum(int(a.size) * a.dtype.itemsize for a in consts)
    kernel = functools.partial(_decoder_kernel, n_blocks=n_blocks,
                               apply_sigmoid=apply_sigmoid)
    return pl.pallas_call(
        kernel,
        out_shape=jax.ShapeDtypeStruct((mp, wp), jnp.float32),
        grid_spec=pltpu.PrefetchScalarGridSpec(
            num_scalar_prefetch=0,
            grid=(mp // tm,),
            in_specs=[
                pl.BlockSpec((tm, hp), lambda i: (i, 0)),          # encoded rows
                _const_spec(tuple(w1s.shape), single_buffer),
                _const_spec(tuple(w2s.shape), single_buffer),
                _const_spec(tuple(b1s.shape), single_buffer),
                _const_spec(tuple(b2s.shape), single_buffer),
                _const_spec(tuple(wf.shape), single_buffer),
                _const_spec(tuple(bf.shape), single_buffer),
            ],
            out_specs=pl.BlockSpec((tm, wp), lambda i: (i, 0)),
        ),
        compiler_params=pltpu.CompilerParams(
            dimension_semantics=("parallel",),
            vmem_limit_bytes=_vmem_limit_bytes(const_bytes, tm, hp, wp, hp),
        ),
    )(h, w1s, w2s, b1s, b2s, wf, bf)


def _forward(x, enc_params, dec_params_list, apply_sigmoid, compute_dtype, tm,
             single_buffer):
    m, w = x.shape
    wp = _round_up(w, LANE)
    hp = _round_up(HIDDEN, LANE)
    # Row tile: big and 128-aligned when rows allow; ragged M handled by padding
    # instead of asserting divisibility.  (On v7x keep tm <= M/2 for large M so
    # the "parallel" grid axis has >= 2 steps to shard across its 2 TensorCores.)
    tm_eff = min(tm, _round_up(m, SUBLANE))
    mp = _round_up(m, tm_eff)

    xp = _pad2d(x.astype(jnp.float32), mp, wp)

    # Weights are laid out (in_features, out_features) (= transposed PyTorch W),
    # zero-padded to lane-dense shapes, and shipped as bf16 MXU operands.
    we = _pad2d(enc_params["we"], wp, hp).astype(compute_dtype)
    ew1 = jnp.stack([_pad2d(a, hp, hp) for a in enc_params["w1"]]).astype(compute_dtype)
    ew2 = jnp.stack([_pad2d(a, hp, hp) for a in enc_params["w2"]]).astype(compute_dtype)

    h = _encoder_call(xp, we, ew1, ew2, tm_eff, single_buffer)       # (mp, hp) f32

    preds = []
    for dec in dec_params_list:
        dw1 = jnp.stack([_pad2d(a, hp, hp) for a in dec["w1"]]).astype(compute_dtype)
        dw2 = jnp.stack([_pad2d(a, hp, hp) for a in dec["w2"]]).astype(compute_dtype)
        db1 = jnp.stack([_pad1d(b, hp)[None, :] for b in dec["b1"]]).astype(jnp.float32)
        db2 = jnp.stack([_pad1d(b, hp)[None, :] for b in dec["b2"]]).astype(jnp.float32)
        wf = _pad2d(dec["wf"], hp, wp).astype(compute_dtype)
        bf = _pad1d(dec["bf"], wp).astype(jnp.float32)[None, :]
        z = _decoder_call(h, dw1, dw2, db1, db2, wf, bf, apply_sigmoid,
                          tm_eff, single_buffer)                     # (mp, wp) f32
        preds.append(z[:m, :w])
    return jnp.concatenate(preds, axis=1)


def window_mlp_forward(x, enc_params, dec_params_list, *, apply_sigmoid,
                       compute_dtype=jnp.bfloat16, tm=256):
    """WindowMLP.forward: x (batch, window) -> (batch, window * heads)."""
    try:
        return _forward(x, enc_params, dec_params_list, apply_sigmoid,
                        compute_dtype, tm, single_buffer=True)
    except Exception:
        # pl.Buffered(1) (single-buffered resident weights) not supported by
        # this Pallas build -> fall back to default double buffering.
        return _forward(x, enc_params, dec_params_list, apply_sigmoid,
                        compute_dtype, tm, single_buffer=False)


# -----------------------------------------------------------------------------
# Pure-JAX reference (matches the PyTorch forward)
# -----------------------------------------------------------------------------
def window_mlp_reference(x, enc_params, dec_params_list, *, apply_sigmoid,
                         compute_dtype=jnp.float32):
    def dot(a, w):
        return jnp.dot(a.astype(compute_dtype), w.astype(compute_dtype),
                       preferred_element_type=jnp.float32)

    def block(a, w1, w2, b1=None, b2=None):
        h = dot(a, w1)
        if b1 is not None:
            h = h + b1
        h = jnp.maximum(h, 0.0)
        y = dot(h, w2)
        if b2 is not None:
            y = y + b2
        y = jnp.maximum(y, 0.0)
        return a + y

    h = dot(x, enc_params["we"])
    for w1, w2 in zip(enc_params["w1"], enc_params["w2"]):
        h = block(h, w1, w2)
    preds = []
    for dec in dec_params_list:
        z = h
        for w1, w2, b1, b2 in zip(dec["w1"], dec["w2"], dec["b1"], dec["b2"]):
            z = block(z, w1, w2, b1, b2)
        z = dot(z, dec["wf"]) + dec["bf"]
        if apply_sigmoid:
            z = 1.0 / (1.0 + jnp.exp(-z))
        preds.append(z)
    return jnp.concatenate(preds, axis=1)


# -----------------------------------------------------------------------------
# Demo
# -----------------------------------------------------------------------------
if __name__ == "__main__":
    window = 16       # network_window_size
    batch = 4
    heads = 3
    norm_mode = "minmax"       # -> Sigmoid appended to each decoder

    key = jax.random.PRNGKey(0)
    keys = iter(jax.random.split(key, 64))

    def linear_init(k, fan_in, fan_out, bias):
        kw, kb = jax.random.split(k)
        bound = 1.0 / jnp.sqrt(jnp.float32(fan_in))
        # Built directly as (in, out) == transposed PyTorch weight.
        w = jax.random.uniform(kw, (fan_in, fan_out), jnp.float32, -bound, bound)
        b = (jax.random.uniform(kb, (fan_out,), jnp.float32, -bound, bound)
             if bias else None)
        return w, b

    # encoder: Linear(window -> 100, bias=False) + 2 MLPBlocks (bias=False)
    we, _ = linear_init(next(keys), window, HIDDEN, False)
    enc_w1, enc_w2 = [], []
    for _ in range(2):
        w1, _ = linear_init(next(keys), HIDDEN, HIDDEN, False)
        w2, _ = linear_init(next(keys), HIDDEN, HIDDEN, False)
        enc_w1.append(w1)
        enc_w2.append(w2)
    enc_params = {"we": we, "w1": enc_w1, "w2": enc_w2}

    # one decoder: 6 MLPBlocks (bias=True) + Linear(100 -> window, bias=True)
    dw1, dw2, db1, db2 = [], [], [], []
    for _ in range(6):
        w1, b1 = linear_init(next(keys), HIDDEN, HIDDEN, True)
        w2, b2 = linear_init(next(keys), HIDDEN, HIDDEN, True)
        dw1.append(w1); dw2.append(w2); db1.append(b1); db2.append(b2)
    wf, bf = linear_init(next(keys), HIDDEN, window, True)
    dec_params = {"w1": dw1, "w2": dw2, "b1": db1, "b2": db2, "wf": wf, "bf": bf}
    # nn.ModuleList([decoder for _ in range(heads)]) re-uses the SAME module,
    # so every head shares these weights.
    dec_params_list = [dec_params] * heads

    x = jax.random.normal(next(keys), (batch, window), jnp.float32)

    out = window_mlp_forward(x, enc_params, dec_params_list,
                             apply_sigmoid=(norm_mode == "minmax"),
                             compute_dtype=jnp.bfloat16, tm=256)
    out = jax.block_until_ready(out)
    assert out.shape == (batch, window * heads)

    # Reference with the same bf16-operand / f32-accumulate casting: tight match.
    ref_bf16 = window_mlp_reference(x, enc_params, dec_params_list,
                                    apply_sigmoid=(norm_mode == "minmax"),
                                    compute_dtype=jnp.bfloat16)
    assert jnp.allclose(out, ref_bf16, atol=5e-3, rtol=5e-3), "mismatch vs bf16 ref"

    # Pure-f32 module semantics: bf16 MXU operands deviate slightly (documented).
    ref_f32 = window_mlp_reference(x, enc_params, dec_params_list,
                                   apply_sigmoid=(norm_mode == "minmax"),
                                   compute_dtype=jnp.float32)
    assert float(jnp.max(jnp.abs(out - ref_f32))) < 5e-2, "too far from f32 ref"

    print("KERNEL_OK")
</pallas_src>

<mosaic_0001>
module attributes {stable_mosaic.version = 11 : i64} {
  func.func @_encoder_kernel(%arg0: i32, %arg1: memref<8x128xf32, #tpu.memory_space<vmem>>, %arg2: memref<128x128xbf16, #tpu.memory_space<vmem>>, %arg3: memref<2x128x128xbf16, #tpu.memory_space<vmem>>, %arg4: memref<2x128x128xbf16, #tpu.memory_space<vmem>>, %arg5: memref<8x128xf32, #tpu.memory_space<vmem>>) attributes {dimension_semantics = [#tpu.dimension_semantics<parallel>], iteration_bounds = array<i64: 1>, scalar_prefetch = 0 : i64, scratch_operands = 0 : i64, tpu.core_type = #tpu.core_type<tc>, window_params = [{transform_indices = @transform_0, window_bounds = array<i64: 8, 128>}, {pipeline_mode = #tpu.pipeline_mode<synchronous>, transform_indices = @transform_1, window_bounds = array<i64: 128, 128>}, {pipeline_mode = #tpu.pipeline_mode<synchronous>, transform_indices = @transform_2, window_bounds = array<i64: 2, 128, 128>}, {pipeline_mode = #tpu.pipeline_mode<synchronous>, transform_indices = @transform_3, window_bounds = array<i64: 2, 128, 128>}, {transform_indices = @transform_4, window_bounds = array<i64: 8, 128>}]} {
    %c0 = arith.constant 0 : index
    %c0_0 = arith.constant 0 : index
    %0 = vector.load %arg1[%c0, %c0_0] : memref<8x128xf32, #tpu.memory_space<vmem>>, vector<8x128xf32>
    %1 = arith.truncf %0 : vector<8x128xf32> to vector<8x128xbf16>
    %c0_1 = arith.constant 0 : index
    %c0_2 = arith.constant 0 : index
    %2 = vector.load %arg2[%c0_1, %c0_2] : memref<128x128xbf16, #tpu.memory_space<vmem>>, vector<128x128xbf16>
    %cst = arith.constant dense<0.000000e+00> : vector<8x128xf32>
    %3 = tpu.matmul %1, %2, %cst {dimension_numbers = #tpu.dot_dimension_numbers<[1], [0], [0], [1], [0, 0, 1, 1], [], []>} : vector<8x128xbf16>, vector<128x128xbf16>, vector<8x128xf32> -> vector<8x128xf32>
    %c0_3 = arith.constant 0 : index
    %c0_4 = arith.constant 0 : index
    %c0_5 = arith.constant 0 : index
    %4 = vector.load %arg3[%c0_3, %c0_4, %c0_5] : memref<2x128x128xbf16, #tpu.memory_space<vmem>>, vector<1x128x128xbf16>
    %5 = vector.shape_cast %4 : vector<1x128x128xbf16> to vector<128x128xbf16>
    %c0_6 = arith.constant 0 : index
    %c0_7 = arith.constant 0 : index
    %c0_8 = arith.constant 0 : index
    %6 = vector.load %arg4[%c0_6, %c0_7, %c0_8] : memref<2x128x128xbf16, #tpu.memory_space<vmem>>, vector<1x128x128xbf16>
    %7 = vector.shape_cast %6 : vector<1x128x128xbf16> to vector<128x128xbf16>
    %8 = arith.truncf %3 : vector<8x128xf32> to vector<8x128xbf16>
    %cst_9 = arith.constant dense<0.000000e+00> : vector<8x128xf32>
    %9 = tpu.matmul %8, %5, %cst_9 {dimension_numbers = #tpu.dot_dimension_numbers<[1], [0], [0], [1], [0, 0, 1, 1], [], []>} : vector<8x128xbf16>, vector<128x128xbf16>, vector<8x128xf32> -> vector<8x128xf32>
    %cst_10 = arith.constant 0.000000e+00 : f32
    %10 = vector.broadcast %cst_10 : f32 to vector<8x128xf32>
    %11 = arith.maximumf %9, %10 : vector<8x128xf32>
    %12 = arith.truncf %11 : vector<8x128xf32> to vector<8x128xbf16>
    %cst_11 = arith.constant dense<0.000000e+00> : vector<8x128xf32>
    %13 = tpu.matmul %12, %7, %cst_11 {dimension_numbers = #tpu.dot_dimension_numbers<[1], [0], [0], [1], [0, 0, 1, 1], [], []>} : vector<8x128xbf16>, vector<128x128xbf16>, vector<8x128xf32> -> vector<8x128xf32>
    %cst_12 = arith.constant 0.000000e+00 : f32
    %14 = vector.broadcast %cst_12 : f32 to vector<8x128xf32>
    %15 = arith.maximumf %13, %14 : vector<8x128xf32>
    %16 = arith.addf %3, %15 : vector<8x128xf32>
    %c1 = arith.constant 1 : index
    %c0_13 = arith.constant 0 : index
    %c0_14 = arith.constant 0 : index
    %17 = vector.load %arg3[%c1, %c0_13, %c0_14] : memref<2x128x128xbf16, #tpu.memory_space<vmem>>, vector<1x128x128xbf16>
    %18 = vector.shape_cast %17 : vector<1x128x128xbf16> to vector<128x128xbf16>
    %c1_15 = arith.constant 1 : index
    %c0_16 = arith.constant 0 : index
    %c0_17 = arith.constant 0 : index
    %19 = vector.load %arg4[%c1_15, %c0_16, %c0_17] : memref<2x128x128xbf16, #tpu.memory_space<vmem>>, vector<1x128x128xbf16>
    %20 = vector.shape_cast %19 : vector<1x128x128xbf16> to vector<128x128xbf16>
    %21 = arith.truncf %16 : vector<8x128xf32> to vector<8x128xbf16>
    %cst_18 = arith.constant dense<0.000000e+00> : vector<8x128xf32>
    %22 = tpu.matmul %21, %18, %cst_18 {dimension_numbers = #tpu.dot_dimension_numbers<[1], [0], [0], [1], [0, 0, 1, 1], [], []>} : vector<8x128xbf16>, vector<128x128xbf16>, vector<8x128xf32> -> vector<8x128xf32>
    %cst_19 = arith.constant 0.000000e+00 : f32
    %23 = vector.broadcast %cst_19 : f32 to vector<8x128xf32>
    %24 = arith.maximumf %22, %23 : vector<8x128xf32>
    %25 = arith.truncf %24 : vector<8x128xf32> to vector<8x128xbf16>
    %cst_20 = arith.constant dense<0.000000e+00> : vector<8x128xf32>
    %26 = tpu.matmul %25, %20, %cst_20 {dimension_numbers = #tpu.dot_dimension_numbers<[1], [0], [0], [1], [0, 0, 1, 1], [], []>} : vector<8x128xbf16>, vector<128x128xbf16>, vector<8x128xf32> -> vector<8x128xf32>
    %cst_21 = arith.constant 0.000000e+00 : f32
    %27 = vector.broadcast %cst_21 : f32 to vector<8x128xf32>
    %28 = arith.maximumf %26, %27 : vector<8x128xf32>
    %29 = arith.addf %16, %28 : vector<8x128xf32>
    %c0_22 = arith.constant 0 : index
    %c0_23 = arith.constant 0 : index
    %30 = vector.load %arg5[%c0_22, %c0_23] : memref<8x128xf32, #tpu.memory_space<vmem>>, vector<8x128xf32>
    tpu.vector_store %arg5[%c0_22, %c0_23], %29 {strides = array<i32>} : memref<8x128xf32, #tpu.memory_space<vmem>>, vector<8x128xf32>,
    return
  }
  func.func @transform_0(%arg0: i32) -> (i32, i32) {
    %c0_i32 = arith.constant 0 : i32
    %c0_i32_0 = arith.constant 0 : i32
    return %arg0, %c0_i32 : i32, i32
  }
  func.func @transform_1(%arg0: i32) -> (i32, i32) {
    %c0_i32 = arith.constant 0 : i32
    %c0_i32_0 = arith.constant 0 : i32
    %c0_i32_1 = arith.constant 0 : i32
    return %c0_i32, %c0_i32_0 : i32, i32
  }
  func.func @transform_2(%arg0: i32) -> (i32, i32, i32) {
    %c0_i32 = arith.constant 0 : i32
    %c0_i32_0 = arith.constant 0 : i32
    %c0_i32_1 = arith.constant 0 : i32
    %c0_i32_2 = arith.constant 0 : i32
    return %c0_i32, %c0_i32_0, %c0_i32_1 : i32, i32, i32
  }
  func.func @transform_3(%arg0: i32) -> (i32, i32, i32) {
    %c0_i32 = arith.constant 0 : i32
    %c0_i32_0 = arith.constant 0 : i32
    %c0_i32_1 = arith.constant 0 : i32
    %c0_i32_2 = arith.constant 0 : i32
    return %c0_i32, %c0_i32_0, %c0_i32_1 : i32, i32, i32
  }
  func.func @transform_4(%arg0: i32) -> (i32, i32) {
    %c0_i32 = arith.constant 0 : i32
    %c0_i32_0 = arith.constant 0 : i32
    return %arg0, %c0_i32 : i32, i32
  }
}

module attributes {stable_mosaic.version = 11 : i64} {
  func.func @_encoder_kernel(%arg0: i32, %arg1: memref<8x128xf32, #tpu.memory_space<vmem>>, %arg2: memref<128x128xbf16, #tpu.memory_space<vmem>>, %arg3: memref<2x128x128xbf16, #tpu.memory_space<vmem>>, %arg4: memref<2x128x128xbf16, #tpu.memory_space<vmem>>, %arg5: memref<8x128xf32, #tpu.memory_space<vmem>>) attributes {dimension_semantics = [#tpu.dimension_semantics<parallel>], iteration_bounds = array<i64: 1>, scalar_prefetch = 0 : i64, scratch_operands = 0 : i64, tpu.core_type = #tpu.core_type<tc>, window_params = [{transform_indices = @transform_0, window_bounds = array<i64: 8, 128>}, {pipeline_mode = #tpu.pipeline_mode<synchronous>, transform_indices = @transform_1, window_bounds = array<i64: 128, 128>}, {pipeline_mode = #tpu.pipeline_mode<synchronous>, transform_indices = @transform_2, window_bounds = array<i64: 2, 128, 128>}, {pipeline_mode = #tpu.pipeline_mode<synchronous>, transform_indices = @transform_3, window_bounds = array<i64: 2, 128, 128>}, {transform_indices = @transform_4, window_bounds = array<i64: 8, 128>}]} {
    %c0 = arith.constant 0 : index
    %c0_0 = arith.constant 0 : index
    %0 = vector.load %arg1[%c0, %c0_0] : memref<8x128xf32, #tpu.memory_space<vmem>>, vector<8x128xf32>
    %1 = arith.truncf %0 : vector<8x128xf32> to vector<8x128xbf16>
    %c0_1 = arith.constant 0 : index
    %c0_2 = arith.constant 0 : index
    %2 = vector.load %arg2[%c0_1, %c0_2] : memref<128x128xbf16, #tpu.memory_space<vmem>>, vector<128x128xbf16>
    %cst = arith.constant dense<0.000000e+00> : vector<8x128xf32>
    %3 = tpu.matmul %1, %2, %cst {dimension_numbers = #tpu.dot_dimension_numbers<[1], [0], [0], [1], [0, 0, 1, 1], [], []>} : vector<8x128xbf16>, vector<128x128xbf16>, vector<8x128xf32> -> vector<8x128xf32>
    %c0_3 = arith.constant 0 : index
    %c0_4 = arith.constant 0 : index
    %c0_5 = arith.constant 0 : index
    %4 = vector.load %arg3[%c0_3, %c0_4, %c0_5] : memref<2x128x128xbf16, #tpu.memory_space<vmem>>, vector<1x128x128xbf16>
    %5 = vector.shape_cast %4 : vector<1x128x128xbf16> to vector<128x128xbf16>
    %c0_6 = arith.constant 0 : index
    %c0_7 = arith.constant 0 : index
    %c0_8 = arith.constant 0 : index
    %6 = vector.load %arg4[%c0_6, %c0_7, %c0_8] : memref<2x128x128xbf16, #tpu.memory_space<vmem>>, vector<1x128x128xbf16>
    %7 = vector.shape_cast %6 : vector<1x128x128xbf16> to vector<128x128xbf16>
    %8 = arith.truncf %3 : vector<8x128xf32> to vector<8x128xbf16>
    %cst_9 = arith.constant dense<0.000000e+00> : vector<8x128xf32>
    %9 = tpu.matmul %8, %5, %cst_9 {dimension_numbers = #tpu.dot_dimension_numbers<[1], [0], [0], [1], [0, 0, 1, 1], [], []>} : vector<8x128xbf16>, vector<128x128xbf16>, vector<8x128xf32> -> vector<8x128xf32>
    %cst_10 = arith.constant 0.000000e+00 : f32
    %10 = vector.broadcast %cst_10 : f32 to vector<8x128xf32>
    %11 = arith.maximumf %9, %10 : vector<8x128xf32>
    %12 = arith.truncf %11 : vector<8x128xf32> to vector<8x128xbf16>
    %cst_11 = arith.constant dense<0.000000e+00> : vector<8x128xf32>
    %13 = tpu.matmul %12, %7, %cst_11 {dimension_numbers = #tpu.dot_dimension_numbers<[1], [0], [0], [1], [0, 0, 1, 1], [], []>} : vector<8x128xbf16>, vector<128x128xbf16>, vector<8x128xf32> -> vector<8x128xf32>
    %cst_12 = arith.constant 0.000000e+00 : f32
    %14 = vector.broadcast %cst_12 : f32 to vector<8x128xf32>
    %15 = arith.maximumf %13, %14 : vector<8x128xf32>
    %16 = arith.addf %3, %15 : vector<8x128xf32>
    %c1 = arith.constant 1 : index
    %c0_13 = arith.constant 0 : index
    %c0_14 = arith.constant 0 : index
    %17 = vector.load %arg3[%c1, %c0_13, %c0_14] : memref<2x128x128xbf16, #tpu.memory_space<vmem>>, vector<1x128x128xbf16>
    %18 = vector.shape_cast %17 : vector<1x128x128xbf16> to vector<128x128xbf16>
    %c1_15 = arith.constant 1 : index
    %c0_16 = arith.constant 0 : index
    %c0_17 = arith.constant 0 : index
    %19 = vector.load %arg4[%c1_15, %c0_16, %c0_17] : memref<2x128x128xbf16, #tpu.memory_space<vmem>>, vector<1x128x128xbf16>
    %20 = vector.shape_cast %19 : vector<1x128x128xbf16> to vector<128x128xbf16>
    %21 = arith.truncf %16 : vector<8x128xf32> to vector<8x128xbf16>
    %cst_18 = arith.constant dense<0.000000e+00> : vector<8x128xf32>
    %22 = tpu.matmul %21, %18, %cst_18 {dimension_numbers = #tpu.dot_dimension_numbers<[1], [0], [0], [1], [0, 0, 1, 1], [], []>} : vector<8x128xbf16>, vector<128x128xbf16>, vector<8x128xf32> -> vector<8x128xf32>
    %cst_19 = arith.constant 0.000000e+00 : f32
    %23 = vector.broadcast %cst_19 : f32 to vector<8x128xf32>
    %24 = arith.maximumf %22, %23 : vector<8x128xf32>
    %25 = arith.truncf %24 : vector<8x128xf32> to vector<8x128xbf16>
    %cst_20 = arith.constant dense<0.000000e+00> : vector<8x128xf32>
    %26 = tpu.matmul %25, %20, %cst_20 {dimension_numbers = #tpu.dot_dimension_numbers<[1], [0], [0], [1], [0, 0, 1, 1], [], []>} : vector<8x128xbf16>, vector<128x128xbf16>, vector<8x128xf32> -> vector<8x128xf32>
    %cst_21 = arith.constant 0.000000e+00 : f32
    %27 = vector.broadcast %cst_21 : f32 to vector<8x128xf32>
    %28 = arith.maximumf %26, %27 : vector<8x128xf32>
    %29 = arith.addf %16, %28 : vector<8x128xf32>
    %c0_22 = arith.constant 0 : index
    %c0_23 = arith.constant 0 : index
    %30 = vector.load %arg5[%c0_22, %c0_23] : memref<8x128xf32, #tpu.memory_space<vmem>>, vector<8x128xf32>
    tpu.vector_store %arg5[%c0_22, %c0_23], %29 {strides = array<i32>} : memref<8x128xf32, #tpu.memory_space<vmem>>, vector<8x128xf32>,
    return
  }
  func.func @transform_0(%arg0: i32) -> (i32, i32) {
    %c0_i32 = arith.constant 0 : i32
    %c0_i32_0 = arith.constant 0 : i32
    return %arg0, %c0_i32 : i32, i32
  }
  func.func @transform_1(%arg0: i32) -> (i32, i32) {
    %c0_i32 = arith.constant 0 : i32
    %c0_i32_0 = arith.constant 0 : i32
    %c0_i32_1 = arith.constant 0 : i32
    return %c0_i32, %c0_i32_0 : i32, i32
  }
  func.func @transform_2(%arg0: i32) -> (i32, i32, i32) {
    %c0_i32 = arith.constant 0 : i32
    %c0_i32_0 = arith.constant 0 : i32
    %c0_i32_1 = arith.constant 0 : i32
    %c0_i32_2 = arith.constant 0 : i32
    return %c0_i32, %c0_i32_0, %c0_i32_1 : i32, i32, i32
  }
  func.func @transform_3(%arg0: i32) -> (i32, i32, i32) {
    %c0_i32 = arith.constant 0 : i32
    %c0_i32_0 = arith.constant 0 : i32
    %c0_i32_1 = arith.constant 0 : i32
    %c0_i32_2 = arith.constant 0 : i32
    return %c0_i32, %c0_i32_0, %c0_i32_1 : i32, i32, i32
  }
  func.func @transform_4(%arg0: i32) -> (i32, i32) {
    %c0_i32 = arith.constant 0 : i32
    %c0_i32_0 = arith.constant 0 : i32
    return %arg0, %c0_i32 : i32, i32
  }
}

</mosaic_0001>

<llo_original>
// kernel: tpu_custom_call.1
$region0: #{tpu_custom_call.1}
  #allocation0 [shape = 'u32[]', space=smem, size = 0x4, offset = 0x4, fixed_abs, tag = 'smem constant byte address 0x4 - core index']
  #allocation1 [shape = 'u32[72,128]{1,0:T(1,128)}', space=vmem, size = 0x9000, scoped, tag = 'internal scratch']
  %s0 = inlined_call_operand.hbm [shape: f32[8,128], index: 0, kind: input, shape index: {}]
  %s1 = inlined_call_operand.hbm [shape: bf16[128,128], index: 1, kind: input, shape index: {}]
  %s2 = inlined_call_operand.hbm [shape: bf16[2,128,128], index: 2, kind: input, shape index: {}]
  %s3 = inlined_call_operand.hbm [shape: bf16[2,128,128], index: 3, kind: input, shape index: {}]
  %s4 = inlined_call_operand.hbm [shape: f32[8,128], index: 4, kind: output, shape index: {}]
  %s5 = sld [smem:[#allocation0]]
  $region42: #{tpu_custom_call.1} parent=0
    _
  %s7 = ssub.s32 1, %s5
  %s8 = scalar_select 0, %s7, %s5
  $region1: #{tpu_custom_call.1} parent=0
    #allocation2 [shape = 'u8[4096]{0}', space=vmem, size = 0x1000, scoped, tag = 'input window, operand 0, single buffered']
    #allocation3 [shape = 's32[1]{0}', space=sflag, size = 0x4, scoped, tag = 'scoped memory for tpu_custom_call.1']
    #allocation4 [shape = 's32[1]{0}', space=sflag, size = 0x4, scoped, tag = 'scoped memory for tpu_custom_call.1']
    #allocation5 [shape = 'u8[32768]{0}', space=vmem, size = 0x8000, scoped, tag = 'input window, operand 1, single buffered']
    #allocation6 [shape = 's32[1]{0}', space=sflag, size = 0x4, scoped, tag = 'scoped memory for tpu_custom_call.1']
    #allocation7 [shape = 'u8[65536]{0}', space=vmem, size = 0x10000, scoped, tag = 'input window, operand 2, single buffered']
    #allocation8 [shape = 'u8[65536]{0}', space=vmem, size = 0x10000, scoped, tag = 'input window, operand 3, single buffered']
    #allocation9 [shape = 's32[1]{0}', space=sflag, size = 0x4, scoped, tag = 'scoped memory for tpu_custom_call.1']
    #allocation10 [shape = 'u8[4096]{0}', space=vmem, size = 0x1000, scoped, tag = 'output window, operand 0, single buffered']
    %9 = vsyncpa [#allocation3], 0
    %10 = vsyncpa [#allocation6], 0
    %11 = vsyncpa [#allocation9], 0
    %12 = vsyncpa [#allocation4], 0
    // Predicated region
    $region2: #{tpu_custom_call.1} parent=1 // pred_check
      _
    $region3: #{tpu_custom_call.1} parent=1 // pred_check_branch
      %14 = sbr.rel (0) target = $region5
    $region4: #{tpu_custom_call.1} parent=1 // pred_region
      %16 = vsyncadd [#allocation3], 0
      %s18 = sshll.u32 %s0, 4
      %s19 = int_to_ptr.hbm [resolvable:$true] %s18
      %s20 = sshll.u32 [#allocation2], 4
      %s21 = int_to_ptr.vmem [resolvable:$true] %s20
      %23 = dma.hbm_to_vmem [thread:$0]  %s19, 128, %s21, [#allocation3]
    $region5: #{tpu_custom_call.1} parent=1 // pred_fallthru
      _
    // Predicated region
    $region6: #{tpu_custom_call.1} parent=1 // pred_check
      _
    $region7: #{tpu_custom_call.1} parent=1 // pred_check_branch
      %25 = sbr.rel (0) target = $region9
    $region8: #{tpu_custom_call.1} parent=1 // pred_region
      %27 = vsyncadd [#allocation6], 0
      %s28 = sshll.u32 %s1, 4
      %s29 = int_to_ptr.hbm [resolvable:$true] %s28
      %s30 = sshll.u32 [#allocation5], 4
      %s31 = int_to_ptr.vmem [resolvable:$true] %s30
      %36 = dma.hbm_to_vmem [thread:$0]  %s29, 1024, %s31, [#allocation6], 64, 64, 4
    $region9: #{tpu_custom_call.1} parent=1 // pred_fallthru
      _
    // Predicated region
    $region10: #{tpu_custom_call.1} parent=1 // pred_check
      _
    $region11: #{tpu_custom_call.1} parent=1 // pred_check_branch
      %38 = sbr.rel (0) target = $region13
    $region12: #{tpu_custom_call.1} parent=1 // pred_region
      %40 = vsyncadd [#allocation6], 0
      %s41 = sshll.u32 %s2, 4
      %s42 = int_to_ptr.hbm [resolvable:$true] %s41
      %s43 = sshll.u32 [#allocation7], 4
      %s44 = int_to_ptr.vmem [resolvable:$true] %s43
      %49 = dma.hbm_to_vmem [thread:$0]  %s42, 2048, %s44, [#allocation6], 64, 64, 4
    $region13: #{tpu_custom_call.1} parent=1 // pred_fallthru
      _
    // Predicated region
    $region14: #{tpu_custom_call.1} parent=1 // pred_check
      _
    $region15: #{tpu_custom_call.1} parent=1 // pred_check_branch
      %51 = sbr.rel (0) target = $region17
    $region16: #{tpu_custom_call.1} parent=1 // pred_region
      %53 = vsyncadd [#allocation9], 0
      %s54 = sshll.u32 %s3, 4
      %s55 = int_to_ptr.hbm [resolvable:$true] %s54
      %s56 = sshll.u32 [#allocation8], 4
      %s57 = int_to_ptr.vmem [resolvable:$true] %s56
      %62 = dma.hbm_to_vmem [thread:$0]  %s55, 2048, %s57, [#allocation9], 64, 64, 4
    $region17: #{tpu_custom_call.1} parent=1 // pred_fallthru
      _
    // Predicated region
    $region18: #{tpu_custom_call.1} parent=1 // pred_check
      _
    $region19: #{tpu_custom_call.1} parent=1 // pred_check_branch
      %64 = sbr.rel (0) target = $region21
    $region20: #{tpu_custom_call.1} parent=1 // pred_region
      %66 = dma.done [#allocation3], 128
    $region21: #{tpu_custom_call.1} parent=1 // pred_fallthru
      _
    // Predicated region
    $region22: #{tpu_custom_call.1} parent=1 // pred_check
      _
    $region23: #{tpu_custom_call.1} parent=1 // pred_check_branch
      %68 = sbr.rel (0) target = $region25
    $region24: #{tpu_custom_call.1} parent=1 // pred_region
      %70 = dma.done [#allocation6], 1024
    $region25: #{tpu_custom_call.1} parent=1 // pred_fallthru
      _
    // Predicated region
    $region26: #{tpu_custom_call.1} parent=1 // pred_check
      _
    $region27: #{tpu_custom_call.1} parent=1 // pred_check_branch
      %72 = sbr.rel (0) target = $region29
    $region28: #{tpu_custom_call.1} parent=1 // pred_region
      %74 = dma.done [#allocation6], 2048
    $region29: #{tpu_custom_call.1} parent=1 // pred_fallthru
      _
    // Predicated region
    $region30: #{tpu_custom_call.1} parent=1 // pred_check
      _
    $region31: #{tpu_custom_call.1} parent=1 // pred_check_branch
      %76 = sbr.rel (0) target = $region33
    $region32: #{tpu_custom_call.1} parent=1 // pred_region
      %78 = dma.done [#allocation9], 2048
    $region33: #{tpu_custom_call.1} parent=1 // pred_fallthru
      _
    %v79 = vld [vmem:[#allocation2] sm:$0xff]
    %v80 = vpack.c.bf16 %v79, %v79
    %v81 = vld [vmem:[#allocation5] sm:$0xf]
    %v82 = vld [vmem:[#allocation5 + $0x4] sm:$0xf]
    %v83 = vld [vmem:[#allocation5 + $0x8] sm:$0xf]
    %v84 = vld [vmem:[#allocation5 + $0xc] sm:$0xf]
    %v85 = vld [vmem:[#allocation5 + $0x10] sm:$0xf]
    %v86 = vld [vmem:[#allocation5 + $0x14] sm:$0xf]
    %v87 = vld [vmem:[#allocation5 + $0x18] sm:$0xf]
    %v88 = vld [vmem:[#allocation5 + $0x1c] sm:$0xf]
    %v89 = vld [vmem:[#allocation5 + $0x20] sm:$0xf]
    %v90 = vld [vmem:[#allocation5 + $0x24] sm:$0xf]
    %v91 = vld [vmem:[#allocation5 + $0x28] sm:$0xf]
    %v92 = vld [vmem:[#allocation5 + $0x2c] sm:$0xf]
    %v93 = vld [vmem:[#allocation5 + $0x30] sm:$0xf]
    %v94 = vld [vmem:[#allocation5 + $0x34] sm:$0xf]
    %v95 = vld [vmem:[#allocation5 + $0x38] sm:$0xf]
    %v96 = vld [vmem:[#allocation5 + $0x3c] sm:$0xf]
    %v113 = vunpack.c.l.b16 %v81
    %v114 = vunpack.c.l.b16 %v82
    %v115 = vunpack.c.l.b16 %v83
    %v116 = vunpack.c.l.b16 %v84
    %v117 = vunpack.c.l.b16 %v85
    %v118 = vunpack.c.l.b16 %v86
    %v119 = vunpack.c.l.b16 %v87
    %v120 = vunpack.c.l.b16 %v88
    %v121 = vunpack.c.l.b16 %v89
    %v122 = vunpack.c.l.b16 %v90
    %v123 = vunpack.c.l.b16 %v91
    %v124 = vunpack.c.l.b16 %v92
    %v125 = vunpack.c.l.b16 %v93
    %v126 = vunpack.c.l.b16 %v94
    %v127 = vunpack.c.l.b16 %v95
    %v128 = vunpack.c.l.b16 %v96
    %v129 = vpack.c.b16 %v114, %v113
    %v130 = vpack.c.b16 %v116, %v115
    %v131 = vpack.c.b16 %v118, %v117
    %v132 = vpack.c.b16 %v120, %v119
    %v133 = vpack.c.b16 %v122, %v121
    %v134 = vpack.c.b16 %v124, %v123
    %v135 = vpack.c.b16 %v126, %v125
    %v136 = vpack.c.b16 %v128, %v127
    %145 = vmatpush.bf16.msra.mxu0 %v136
    %146 = vmatpush.bf16.msra.mxu0 %v135
    %147 = vmatpush.bf16.msra.mxu0 %v134
    %148 = vmatpush.bf16.msra.mxu0 %v133
    %149 = vmatpush.bf16.msra.mxu0 %v132
    %150 = vmatpush.bf16.msra.mxu0 %v131
    %151 = vmatpush.bf16.msra.mxu0 %v130
    %152 = vmatpush.bf16.msra.mxu0 %v129
    %153 = vmatmul.bf16.gmra.mxu0 %v80
    %v154 = vpop.f32.mrf.mxu0
    %v155 = vadd.f32 0.0, %v154
    %v156 = vpop.f32.mrf.mxu0
    %157 = vdwg.mxu0
    %v158 = vld [vmem:[#allocation7] sm:$0xf]
    %v159 = vld [vmem:[#allocation7 + $0x4] sm:$0xf]
    %v160 = vld [vmem:[#allocation7 + $0x8] sm:$0xf]
    %v161 = vld [vmem:[#allocation7 + $0xc] sm:$0xf]
    %v162 = vld [vmem:[#allocation7 + $0x10] sm:$0xf]
    %v163 = vld [vmem:[#allocation7 + $0x14] sm:$0xf]
    %v164 = vld [vmem:[#allocation7 + $0x18] sm:$0xf]
    %v165 = vld [vmem:[#allocation7 + $0x1c] sm:$0xf]
    %v166 = vld [vmem:[#allocation7 + $0x20] sm:$0xf]
    %v167 = vld [vmem:[#allocation7 + $0x24] sm:$0xf]
    %v168 = vld [vmem:[#allocation7 + $0x28] sm:$0xf]
    %v169 = vld [vmem:[#allocation7 + $0x2c] sm:$0xf]
    %v170 = vld [vmem:[#allocation7 + $0x30] sm:$0xf]
    %v171 = vld [vmem:[#allocation7 + $0x34] sm:$0xf]
    %v172 = vld [vmem:[#allocation7 + $0x38] sm:$0xf]
    %v173 = vld [vmem:[#allocation7 + $0x3c] sm:$0xf]
    %v174 = vld [vmem:[#allocation8] sm:$0xf]
    %v175 = vld [vmem:[#allocation8 + $0x4] sm:$0xf]
    %v176 = vld [vmem:[#allocation8 + $0x8] sm:$0xf]
    %v177 = vld [vmem:[#allocation8 + $0xc] sm:$0xf]
    %v178 = vld [vmem:[#allocation8 + $0x10] sm:$0xf]
    %v179 = vld [vmem:[#allocation8 + $0x14] sm:$0xf]
    %v180 = vld [vmem:[#allocation8 + $0x18] sm:$0xf]
    %v181 = vld [vmem:[#allocation8 + $0x1c] sm:$0xf]
    %v182 = vld [vmem:[#allocation8 + $0x20] sm:$0xf]
    %v183 = vld [vmem:[#allocation8 + $0x24] sm:$0xf]
    %v184 = vld [vmem:[#allocation8 + $0x28] sm:$0xf]
    %v185 = vld [vmem:[#allocation8 + $0x2c] sm:$0xf]
    %v186 = vld [vmem:[#allocation8 + $0x30] sm:$0xf]
    %v187 = vld [vmem:[#allocation8 + $0x34] sm:$0xf]
    %v188 = vld [vmem:[#allocation8 + $0x38] sm:$0xf]
    %v189 = vld [vmem:[#allocation8 + $0x3c] sm:$0xf]
    %v190 = vpack.c.bf16 %v155, %v155
    %v207 = vunpack.c.l.b16 %v158
    %v208 = vunpack.c.l.b16 %v159
    %v209 = vunpack.c.l.b16 %v160
    %v210 = vunpack.c.l.b16 %v161
    %v211 = vunpack.c.l.b16 %v162
    %v212 = vunpack.c.l.b16 %v163
    %v213 = vunpack.c.l.b16 %v164
    %v214 = vunpack.c.l.b16 %v165
    %v215 = vunpack.c.l.b16 %v166
    %v216 = vunpack.c.l.b16 %v167
    %v217 = vunpack.c.l.b16 %v168
    %v218 = vunpack.c.l.b16 %v169
    %v219 = vunpack.c.l.b16 %v170
    %v220 = vunpack.c.l.b16 %v171
    %v221 = vunpack.c.l.b16 %v172
    %v222 = vunpack.c.l.b16 %v173
    %v223 = vpack.c.b16 %v208, %v207
    %v224 = vpack.c.b16 %v210, %v209
    %v225 = vpack.c.b16 %v212, %v211
    %v226 = vpack.c.b16 %v214, %v213
    %v227 = vpack.c.b16 %v216, %v215
    %v228 = vpack.c.b16 %v218, %v217
    %v229 = vpack.c.b16 %v220, %v219
    %v230 = vpack.c.b16 %v222, %v221
    %239 = vmatpush.bf16.msra.mxu0 %v230
    %240 = vmatpush.bf16.msra.mxu0 %v229
    %241 = vmatpush.bf16.msra.mxu0 %v228
    %242 = vmatpush.bf16.msra.mxu0 %v227
    %243 = vmatpush.bf16.msra.mxu0 %v226
    %244 = vmatpush.bf16.msra.mxu0 %v225
    %245 = vmatpush.bf16.msra.mxu0 %v224
    %246 = vmatpush.bf16.msra.mxu0 %v223
    %247 = vmatmul.bf16.gmra.mxu0 %v190
    %v248 = vpop.f32.mrf.mxu0
    %v249 = vadd.f32 0.0, %v248
    %v250 = vpop.f32.mrf.mxu0
    %251 = vdwg.mxu0
    %v252 = vmax.f32 %v249, 0.0
    %v253 = vpack.c.bf16 %v252, %v252
    %v270 = vunpack.c.l.b16 %v174
    %v271 = vunpack.c.l.b16 %v175
    %v272 = vunpack.c.l.b16 %v176
    %v273 = vunpack.c.l.b16 %v177
    %v274 = vunpack.c.l.b16 %v178
    %v275 = vunpack.c.l.b16 %v179
    %v276 = vunpack.c.l.b16 %v180
    %v277 = vunpack.c.l.b16 %v181
    %v278 = vunpack.c.l.b16 %v182
    %v279 = vunpack.c.l.b16 %v183
    %v280 = vunpack.c.l.b16 %v184
    %v281 = vunpack.c.l.b16 %v185
    %v282 = vunpack.c.l.b16 %v186
    %v283 = vunpack.c.l.b16 %v187
    %v284 = vunpack.c.l.b16 %v188
    %v285 = vunpack.c.l.b16 %v189
    %v286 = vpack.c.b16 %v271, %v270
    %v287 = vpack.c.b16 %v273, %v272
    %v288 = vpack.c.b16 %v275, %v274
    %v289 = vpack.c.b16 %v277, %v276
    %v290 = vpack.c.b16 %v279, %v278
    %v291 = vpack.c.b16 %v281, %v280
    %v292 = vpack.c.b16 %v283, %v282
    %v293 = vpack.c.b16 %v285, %v284
    %302 = vmatpush.bf16.msra.mxu0 %v293
    %303 = vmatpush.bf16.msra.mxu0 %v292
    %304 = vmatpush.bf16.msra.mxu0 %v291
    %305 = vmatpush.bf16.msra.mxu0 %v290
    %306 = vmatpush.bf16.msra.mxu0 %v289
    %307 = vmatpush.bf16.msra.mxu0 %v288
    %308 = vmatpush.bf16.msra.mxu0 %v287
    %309 = vmatpush.bf16.msra.mxu0 %v286
    %310 = vmatmul.bf16.gmra.mxu0 %v253
    %v311 = vpop.f32.mrf.mxu0
    %v312 = vadd.f32 0.0, %v311
    %v313 = vpop.f32.mrf.mxu0
    %314 = vdwg.mxu0
    %v315 = vmax.f32 %v312, 0.0
    %v316 = vadd.f32 %v155, %v315
    %s317 = scalar_lea.vmem [#allocation7], 64
    %v318 = vld [vmem:[%s317] sm:$0xf]
    %v319 = vld [vmem:[%s317 + $0x4] sm:$0xf]
    %v320 = vld [vmem:[%s317 + $0x8] sm:$0xf]
    %v321 = vld [vmem:[%s317 + $0xc] sm:$0xf]
    %v322 = vld [vmem:[%s317 + $0x10] sm:$0xf]
    %v323 = vld [vmem:[%s317 + $0x14] sm:$0xf]
    %v324 = vld [vmem:[%s317 + $0x18] sm:$0xf]
    %v325 = vld [vmem:[%s317 + $0x1c] sm:$0xf]
    %v326 = vld [vmem:[%s317 + $0x20] sm:$0xf]
    %v327 = vld [vmem:[%s317 + $0x24] sm:$0xf]
    %v328 = vld [vmem:[%s317 + $0x28] sm:$0xf]
    %v329 = vld [vmem:[%s317 + $0x2c] sm:$0xf]
    %v330 = vld [vmem:[%s317 + $0x30] sm:$0xf]
    %v331 = vld [vmem:[%s317 + $0x34] sm:$0xf]
    %v332 = vld [vmem:[%s317 + $0x38] sm:$0xf]
    %v333 = vld [vmem:[%s317 + $0x3c] sm:$0xf]
    %s334 = scalar_lea.vmem [#allocation8], 64
    %v335 = vld [vmem:[%s334] sm:$0xf]
    %v336 = vld [vmem:[%s334 + $0x4] sm:$0xf]
    %v337 = vld [vmem:[%s334 + $0x8] sm:$0xf]
    %v338 = vld [vmem:[%s334 + $0xc] sm:$0xf]
    %v339 = vld [vmem:[%s334 + $0x10] sm:$0xf]
    %v340 = vld [vmem:[%s334 + $0x14] sm:$0xf]
    %v341 = vld [vmem:[%s334 + $0x18] sm:$0xf]
    %v342 = vld [vmem:[%s334 + $0x1c] sm:$0xf]
    %v343 = vld [vmem:[%s334 + $0x20] sm:$0xf]
    %v344 = vld [vmem:[%s334 + $0x24] sm:$0xf]
    %v345 = vld [vmem:[%s334 + $0x28] sm:$0xf]
    %v346 = vld [vmem:[%s334 + $0x2c] sm:$0xf]
    %v347 = vld [vmem:[%s334 + $0x30] sm:$0xf]
    %v348 = vld [vmem:[%s334 + $0x34] sm:$0xf]
    %v349 = vld [vmem:[%s334 + $0x38] sm:$0xf]
    %v350 = vld [vmem:[%s334 + $0x3c] sm:$0xf]
    %v351 = vpack.c.bf16 %v316, %v316
    %v368 = vunpack.c.l.b16 %v318
    %v369 = vunpack.c.l.b16 %v319
    %v370 = vunpack.c.l.b16 %v320
    %v371 = vunpack.c.l.b16 %v321
    %v372 = vunpack.c.l.b16 %v322
    %v373 = vunpack.c.l.b16 %v323
    %v374 = vunpack.c.l.b16 %v324
    %v375 = vunpack.c.l.b16 %v325
    %v376 = vunpack.c.l.b16 %v326
    %v377 = vunpack.c.l.b16 %v327
    %v378 = vunpack.c.l.b16 %v328
    %v379 = vunpack.c.l.b16 %v329
    %v380 = vunpack.c.l.b16 %v330
    %v381 = vunpack.c.l.b16 %v331
    %v382 = vunpack.c.l.b16 %v332
    %v383 = vunpack.c.l.b16 %v333
    %v384 = vpack.c.b16 %v369, %v368
    %v385 = vpack.c.b16 %v371, %v370
    %v386 = vpack.c.b16 %v373, %v372
    %v387 = vpack.c.b16 %v375, %v374
    %v388 = vpack.c.b16 %v377, %v376
    %v389 = vpack.c.b16 %v379, %v378
    %v390 = vpack.c.b16 %v381, %v380
    %v391 = vpack.c.b16 %v383, %v382
    %400 = vmatpush.bf16.msra.mxu0 %v391
    %401 = vmatpush.bf16.msra.mxu0 %v390
    %402 = vmatpush.bf16.msra.mxu0 %v389
    %403 = vmatpush.bf16.msra.mxu0 %v388
    %404 = vmatpush.bf16.msra.mxu0 %v387
    %405 = vmatpush.bf16.msra.mxu0 %v386
    %406 = vmatpush.bf16.msra.mxu0 %v385
    %407 = vmatpush.bf16.msra.mxu0 %v384
    %408 = vmatmul.bf16.gmra.mxu0 %v351
    %v409 = vpop.f32.mrf.mxu0
    %v410 = vadd.f32 0.0, %v409
    %v411 = vpop.f32.mrf.mxu0
    %412 = vdwg.mxu0
    %v413 = vmax.f32 %v410, 0.0
    %v414 = vpack.c.bf16 %v413, %v413
    %v431 = vunpack.c.l.b16 %v335
    %v432 = vunpack.c.l.b16 %v336
    %v433 = vunpack.c.l.b16 %v337
    %v434 = vunpack.c.l.b16 %v338
    %v435 = vunpack.c.l.b16 %v339
    %v436 = vunpack.c.l.b16 %v340
    %v437 = vunpack.c.l.b16 %v341
    %v438 = vunpack.c.l.b16 %v342
    %v439 = vunpack.c.l.b16 %v343
    %v440 = vunpack.c.l.b16 %v344
    %v441 = vunpack.c.l.b16 %v345
    %v442 = vunpack.c.l.b16 %v346
    %v443 = vunpack.c.l.b16 %v347
    %v444 = vunpack.c.l.b16 %v348
    %v445 = vunpack.c.l.b16 %v349
    %v446 = vunpack.c.l.b16 %v350
    %v447 = vpack.c.b16 %v432, %v431
    %v448 = vpack.c.b16 %v434, %v433
    %v449 = vpack.c.b16 %v436, %v435
    %v450 = vpack.c.b16 %v438, %v437
    %v451 = vpack.c.b16 %v440, %v439
    %v452 = vpack.c.b16 %v442, %v441
    %v453 = vpack.c.b16 %v444, %v443
    %v454 = vpack.c.b16 %v446, %v445
    %463 = vmatpush.bf16.msra.mxu0 %v454
    %464 = vmatpush.bf16.msra.mxu0 %v453
    %465 = vmatpush.bf16.msra.mxu0 %v452
    %466 = vmatpush.bf16.msra.mxu0 %v451
    %467 = vmatpush.bf16.msra.mxu0 %v450
    %468 = vmatpush.bf16.msra.mxu0 %v449
    %469 = vmatpush.bf16.msra.mxu0 %v448
    %470 = vmatpush.bf16.msra.mxu0 %v447
    %471 = vmatmul.bf16.gmra.mxu0 %v414
    %v472 = vpop.f32.mrf.mxu0
    %v473 = vadd.f32 0.0, %v472
    %v474 = vpop.f32.mrf.mxu0
    %475 = vdwg.mxu0
    %v476 = vmax.f32 %v473, 0.0
    %v477 = vadd.f32 %v316, %v476
    %478 = vst [vmem:[#allocation10] sm:$0xff] %v477
    // Predicated region
    $region34: #{tpu_custom_call.1} parent=1 // pred_check
      _
    $region35: #{tpu_custom_call.1} parent=1 // pred_check_branch
      %480 = sbr.rel (0) target = $region37
    $region36: #{tpu_custom_call.1} parent=1 // pred_region
      %482 = vsyncadd [#allocation4], 0
      %s484 = sshll.u32 [#allocation10], 4
      %s485 = int_to_ptr.vmem [resolvable:$true] %s484
      %s486 = sshll.u32 %s4, 4
      %s487 = int_to_ptr.hbm [resolvable:$true] %s486
      %489 = dma.vmem_to_hbm [thread:$0]  %s485, 128, %s487, [#allocation4]
    $region37: #{tpu_custom_call.1} parent=1 // pred_fallthru
      _
    // Predicated region
    $region38: #{tpu_custom_call.1} parent=1 // pred_check
      _
    $region39: #{tpu_custom_call.1} parent=1 // pred_check_branch
      %491 = sbr.rel (0) target = $region41
    $region40: #{tpu_custom_call.1} parent=1 // pred_region
      %493 = dma.done [#allocation4], 128
    $region41: #{tpu_custom_call.1} parent=1 // pred_fallthru
      _
    %494 = vsyncpa [#allocation3], 1
    %495 = vsyncpa [#allocation6], 1
    %496 = vsyncpa [#allocation9], 1
    %497 = vsyncpa [#allocation4], 1

// kernel: tpu_custom_call.1
$region0: #{tpu_custom_call.1}
  #allocation0 [shape = 'u32[]', space=smem, size = 0x4, offset = 0x4, fixed_abs, tag = 'smem constant byte address 0x4 - core index']
  #allocation1 [shape = 'u32[72,128]{1,0:T(1,128)}', space=vmem, size = 0x9000, scoped, tag = 'internal scratch']
  %s0 = inlined_call_operand.hbm [shape: f32[8,128], index: 0, kind: input, shape index: {}]
  %s1 = inlined_call_operand.hbm [shape: bf16[128,128], index: 1, kind: input, shape index: {}]
  %s2 = inlined_call_operand.hbm [shape: bf16[2,128,128], index: 2, kind: input, shape index: {}]
  %s3 = inlined_call_operand.hbm [shape: bf16[2,128,128], index: 3, kind: input, shape index: {}]
  %s4 = inlined_call_operand.hbm [shape: f32[8,128], index: 4, kind: output, shape index: {}]
  %s5 = sld [smem:[#allocation0]]
  $region42: #{tpu_custom_call.1} parent=0
    _
  %s7 = ssub.s32 1, %s5
  %s8 = scalar_select 0, %s7, %s5
  $region1: #{tpu_custom_call.1} parent=0
    #allocation2 [shape = 'u8[4096]{0}', space=vmem, size = 0x1000, scoped, tag = 'input window, operand 0, single buffered']
    #allocation3 [shape = 's32[1]{0}', space=sflag, size = 0x4, scoped, tag = 'scoped memory for tpu_custom_call.1']
    #allocation4 [shape = 's32[1]{0}', space=sflag, size = 0x4, scoped, tag = 'scoped memory for tpu_custom_call.1']
    #allocation5 [shape = 'u8[32768]{0}', space=vmem, size = 0x8000, scoped, tag = 'input window, operand 1, single buffered']
    #allocation6 [shape = 's32[1]{0}', space=sflag, size = 0x4, scoped, tag = 'scoped memory for tpu_custom_call.1']
    #allocation7 [shape = 'u8[65536]{0}', space=vmem, size = 0x10000, scoped, tag = 'input window, operand 2, single buffered']
    #allocation8 [shape = 'u8[65536]{0}', space=vmem, size = 0x10000, scoped, tag = 'input window, operand 3, single buffered']
    #allocation9 [shape = 's32[1]{0}', space=sflag, size = 0x4, scoped, tag = 'scoped memory for tpu_custom_call.1']
    #allocation10 [shape = 'u8[4096]{0}', space=vmem, size = 0x1000, scoped, tag = 'output window, operand 0, single buffered']
    %9 = vsyncpa [#allocation3], 0
    %10 = vsyncpa [#allocation6], 0
    %11 = vsyncpa [#allocation9], 0
    %12 = vsyncpa [#allocation4], 0
    // Predicated region
    $region2: #{tpu_custom_call.1} parent=1 // pred_check
      _
    $region3: #{tpu_custom_call.1} parent=1 // pred_check_branch
      %14 = sbr.rel (0) target = $region5
    $region4: #{tpu_custom_call.1} parent=1 // pred_region
      %16 = vsyncadd [#allocation3], 0
      %s18 = sshll.u32 %s0, 4
      %s19 = int_to_ptr.hbm [resolvable:$true] %s18
      %s20 = sshll.u32 [#allocation2], 4
      %s21 = int_to_ptr.vmem [resolvable:$true] %s20
      %23 = dma.hbm_to_vmem [thread:$0]  %s19, 128, %s21, [#allocation3]
    $region5: #{tpu_custom_call.1} parent=1 // pred_fallthru
      _
    // Predicated region
    $region6: #{tpu_custom_call.1} parent=1 // pred_check
      _
    $region7: #{tpu_custom_call.1} parent=1 // pred_check_branch
      %25 = sbr.rel (0) target = $region9
    $region8: #{tpu_custom_call.1} parent=1 // pred_region
      %27 = vsyncadd [#allocation6], 0
      %s28 = sshll.u32 %s1, 4
      %s29 = int_to_ptr.hbm [resolvable:$true] %s28
      %s30 = sshll.u32 [#allocation5], 4
      %s31 = int_to_ptr.vmem [resolvable:$true] %s30
      %36 = dma.hbm_to_vmem [thread:$0]  %s29, 1024, %s31, [#allocation6], 64, 64, 4
    $region9: #{tpu_custom_call.1} parent=1 // pred_fallthru
      _
    // Predicated region
    $region10: #{tpu_custom_call.1} parent=1 // pred_check
      _
    $region11: #{tpu_custom_call.1} parent=1 // pred_check_branch
      %38 = sbr.rel (0) target = $region13
    $region12: #{tpu_custom_call.1} parent=1 // pred_region
      %40 = vsyncadd [#allocation6], 0
      %s41 = sshll.u32 %s2, 4
      %s42 = int_to_ptr.hbm [resolvable:$true] %s41
      %s43 = sshll.u32 [#allocation7], 4
      %s44 = int_to_ptr.vmem [resolvable:$true] %s43
      %49 = dma.hbm_to_vmem [thread:$0]  %s42, 2048, %s44, [#allocation6], 64, 64, 4
    $region13: #{tpu_custom_call.1} parent=1 // pred_fallthru
      _
    // Predicated region
    $region14: #{tpu_custom_call.1} parent=1 // pred_check
      _
    $region15: #{tpu_custom_call.1} parent=1 // pred_check_branch
      %51 = sbr.rel (0) target = $region17
    $region16: #{tpu_custom_call.1} parent=1 // pred_region
      %53 = vsyncadd [#allocation9], 0
      %s54 = sshll.u32 %s3, 4
      %s55 = int_to_ptr.hbm [resolvable:$true] %s54
      %s56 = sshll.u32 [#allocation8], 4
      %s57 = int_to_ptr.vmem [resolvable:$true] %s56
      %62 = dma.hbm_to_vmem [thread:$0]  %s55, 2048, %s57, [#allocation9], 64, 64, 4
    $region17: #{tpu_custom_call.1} parent=1 // pred_fallthru
      _
    // Predicated region
    $region18: #{tpu_custom_call.1} parent=1 // pred_check
      _
    $region19: #{tpu_custom_call.1} parent=1 // pred_check_branch
      %64 = sbr.rel (0) target = $region21
    $region20: #{tpu_custom_call.1} parent=1 // pred_region
      %66 = dma.done [#allocation3], 128
    $region21: #{tpu_custom_call.1} parent=1 // pred_fallthru
      _
    // Predicated region
    $region22: #{tpu_custom_call.1} parent=1 // pred_check
      _
    $region23: #{tpu_custom_call.1} parent=1 // pred_check_branch
      %68 = sbr.rel (0) target = $region25
    $region24: #{tpu_custom_call.1} parent=1 // pred_region
      %70 = dma.done [#allocation6], 1024
    $region25: #{tpu_custom_call.1} parent=1 // pred_fallthru
      _
    // Predicated region
    $region26: #{tpu_custom_call.1} parent=1 // pred_check
      _
    $region27: #{tpu_custom_call.1} parent=1 // pred_check_branch
      %72 = sbr.rel (0) target = $region29
    $region28: #{tpu_custom_call.1} parent=1 // pred_region
      %74 = dma.done [#allocation6], 2048
    $region29: #{tpu_custom_call.1} parent=1 // pred_fallthru
      _
    // Predicated region
    $region30: #{tpu_custom_call.1} parent=1 // pred_check
      _
    $region31: #{tpu_custom_call.1} parent=1 // pred_check_branch
      %76 = sbr.rel (0) target = $region33
    $region32: #{tpu_custom_call.1} parent=1 // pred_region
      %78 = dma.done [#allocation9], 2048
    $region33: #{tpu_custom_call.1} parent=1 // pred_fallthru
      _
    %v79 = vld [vmem:[#allocation2] sm:$0xff]
    %v80 = vpack.c.bf16 %v79, %v79
    %v81 = vld [vmem:[#allocation5] sm:$0xf]
    %v82 = vld [vmem:[#allocation5 + $0x4] sm:$0xf]
    %v83 = vld [vmem:[#allocation5 + $0x8] sm:$0xf]
    %v84 = vld [vmem:[#allocation5 + $0xc] sm:$0xf]
    %v85 = vld [vmem:[#allocation5 + $0x10] sm:$0xf]
    %v86 = vld [vmem:[#allocation5 + $0x14] sm:$0xf]
    %v87 = vld [vmem:[#allocation5 + $0x18] sm:$0xf]
    %v88 = vld [vmem:[#allocation5 + $0x1c] sm:$0xf]
    %v89 = vld [vmem:[#allocation5 + $0x20] sm:$0xf]
    %v90 = vld [vmem:[#allocation5 + $0x24] sm:$0xf]
    %v91 = vld [vmem:[#allocation5 + $0x28] sm:$0xf]
    %v92 = vld [vmem:[#allocation5 + $0x2c] sm:$0xf]
    %v93 = vld [vmem:[#allocation5 + $0x30] sm:$0xf]
    %v94 = vld [vmem:[#allocation5 + $0x34] sm:$0xf]
    %v95 = vld [vmem:[#allocation5 + $0x38] sm:$0xf]
    %v96 = vld [vmem:[#allocation5 + $0x3c] sm:$0xf]
    %v113 = vunpack.c.l.b16 %v81
    %v114 = vunpack.c.l.b16 %v82
    %v115 = vunpack.c.l.b16 %v83
    %v116 = vunpack.c.l.b16 %v84
    %v117 = vunpack.c.l.b16 %v85
    %v118 = vunpack.c.l.b16 %v86
    %v119 = vunpack.c.l.b16 %v87
    %v120 = vunpack.c.l.b16 %v88
    %v121 = vunpack.c.l.b16 %v89
    %v122 = vunpack.c.l.b16 %v90
    %v123 = vunpack.c.l.b16 %v91
    %v124 = vunpack.c.l.b16 %v92
    %v125 = vunpack.c.l.b16 %v93
    %v126 = vunpack.c.l.b16 %v94
    %v127 = vunpack.c.l.b16 %v95
    %v128 = vunpack.c.l.b16 %v96
    %v129 = vpack.c.b16 %v114, %v113
    %v130 = vpack.c.b16 %v116, %v115
    %v131 = vpack.c.b16 %v118, %v117
    %v132 = vpack.c.b16 %v120, %v119
    %v133 = vpack.c.b16 %v122, %v121
    %v134 = vpack.c.b16 %v124, %v123
    %v135 = vpack.c.b16 %v126, %v125
    %v136 = vpack.c.b16 %v128, %v127
    %145 = vmatpush.bf16.msra.mxu0 %v136
    %146 = vmatpush.bf16.msra.mxu0 %v135
    %147 = vmatpush.bf16.msra.mxu0 %v134
    %148 = vmatpush.bf16.msra.mxu0 %v133
    %149 = vmatpush.bf16.msra.mxu0 %v132
    %150 = vmatpush.bf16.msra.mxu0 %v131
    %151 = vmatpush.bf16.msra.mxu0 %v130
    %152 = vmatpush.bf16.msra.mxu0 %v129
    %153 = vmatmul.bf16.gmra.mxu0 %v80
    %v154 = vpop.f32.mrf.mxu0
    %v155 = vadd.f32 0.0, %v154
    %v156 = vpop.f32.mrf.mxu0
    %157 = vdwg.mxu0
    %v158 = vld [vmem:[#allocation7] sm:$0xf]
    %v159 = vld [vmem:[#allocation7 + $0x4] sm:$0xf]
    %v160 = vld [vmem:[#allocation7 + $0x8] sm:$0xf]
    %v161 = vld [vmem:[#allocation7 + $0xc] sm:$0xf]
    %v162 = vld [vmem:[#allocation7 + $0x10] sm:$0xf]
    %v163 = vld [vmem:[#allocation7 + $0x14] sm:$0xf]
    %v164 = vld [vmem:[#allocation7 + $0x18] sm:$0xf]
    %v165 = vld [vmem:[#allocation7 + $0x1c] sm:$0xf]
    %v166 = vld [vmem:[#allocation7 + $0x20] sm:$0xf]
    %v167 = vld [vmem:[#allocation7 + $0x24] sm:$0xf]
    %v168 = vld [vmem:[#allocation7 + $0x28] sm:$0xf]
    %v169 = vld [vmem:[#allocation7 + $0x2c] sm:$0xf]
    %v170 = vld [vmem:[#allocation7 + $0x30] sm:$0xf]
    %v171 = vld [vmem:[#allocation7 + $0x34] sm:$0xf]
    %v172 = vld [vmem:[#allocation7 + $0x38] sm:$0xf]
    %v173 = vld [vmem:[#allocation7 + $0x3c] sm:$0xf]
    %v174 = vld [vmem:[#allocation8] sm:$0xf]
    %v175 = vld [vmem:[#allocation8 + $0x4] sm:$0xf]
    %v176 = vld [vmem:[#allocation8 + $0x8] sm:$0xf]
    %v177 = vld [vmem:[#allocation8 + $0xc] sm:$0xf]
    %v178 = vld [vmem:[#allocation8 + $0x10] sm:$0xf]
    %v179 = vld [vmem:[#allocation8 + $0x14] sm:$0xf]
    %v180 = vld [vmem:[#allocation8 + $0x18] sm:$0xf]
    %v181 = vld [vmem:[#allocation8 + $0x1c] sm:$0xf]
    %v182 = vld [vmem:[#allocation8 + $0x20] sm:$0xf]
    %v183 = vld [vmem:[#allocation8 + $0x24] sm:$0xf]
    %v184 = vld [vmem:[#allocation8 + $0x28] sm:$0xf]
    %v185 = vld [vmem:[#allocation8 + $0x2c] sm:$0xf]
    %v186 = vld [vmem:[#allocation8 + $0x30] sm:$0xf]
    %v187 = vld [vmem:[#allocation8 + $0x34] sm:$0xf]
    %v188 = vld [vmem:[#allocation8 + $0x38] sm:$0xf]
    %v189 = vld [vmem:[#allocation8 + $0x3c] sm:$0xf]
    %v190 = vpack.c.bf16 %v155, %v155
    %v207 = vunpack.c.l.b16 %v158
    %v208 = vunpack.c.l.b16 %v159
    %v209 = vunpack.c.l.b16 %v160
    %v210 = vunpack.c.l.b16 %v161
    %v211 = vunpack.c.l.b16 %v162
    %v212 = vunpack.c.l.b16 %v163
    %v213 = vunpack.c.l.b16 %v164
    %v214 = vunpack.c.l.b16 %v165
    %v215 = vunpack.c.l.b16 %v166
    %v216 = vunpack.c.l.b16 %v167
    %v217 = vunpack.c.l.b16 %v168
    %v218 = vunpack.c.l.b16 %v169
    %v219 = vunpack.c.l.b16 %v170
    %v220 = vunpack.c.l.b16 %v171
    %v221 = vunpack.c.l.b16 %v172
    %v222 = vunpack.c.l.b16 %v173
    %v223 = vpack.c.b16 %v208, %v207
    %v224 = vpack.c.b16 %v210, %v209
    %v225 = vpack.c.b16 %v212, %v211
    %v226 = vpack.c.b16 %v214, %v213
    %v227 = vpack.c.b16 %v216, %v215
    %v228 = vpack.c.b16 %v218, %v217
    %v229 = vpack.c.b16 %v220, %v219
    %v230 = vpack.c.b16 %v222, %v221
    %239 = vmatpush.bf16.msra.mxu0 %v230
    %240 = vmatpush.bf16.msra.mxu0 %v229
    %241 = vmatpush.bf16.msra.mxu0 %v228
    %242 = vmatpush.bf16.msra.mxu0 %v227
    %243 = vmatpush.bf16.msra.mxu0 %v226
    %244 = vmatpush.bf16.msra.mxu0 %v225
    %245 = vmatpush.bf16.msra.mxu0 %v224
    %246 = vmatpush.bf16.msra.mxu0 %v223
    %247 = vmatmul.bf16.gmra.mxu0 %v190
    %v248 = vpop.f32.mrf.mxu0
    %v249 = vadd.f32 0.0, %v248
    %v250 = vpop.f32.mrf.mxu0
    %251 = vdwg.mxu0
    %v252 = vmax.f32 %v249, 0.0
    %v253 = vpack.c.bf16 %v252, %v252
    %v270 = vunpack.c.l.b16 %v174
    %v271 = vunpack.c.l.b16 %v175
    %v272 = vunpack.c.l.b16 %v176
    %v273 = vunpack.c.l.b16 %v177
    %v274 = vunpack.c.l.b16 %v178
    %v275 = vunpack.c.l.b16 %v179
    %v276 = vunpack.c.l.b16 %v180
    %v277 = vunpack.c.l.b16 %v181
    %v278 = vunpack.c.l.b16 %v182
    %v279 = vunpack.c.l.b16 %v183
    %v280 = vunpack.c.l.b16 %v184
    %v281 = vunpack.c.l.b16 %v185
    %v282 = vunpack.c.l.b16 %v186
    %v283 = vunpack.c.l.b16 %v187
    %v284 = vunpack.c.l.b16 %v188
    %v285 = vunpack.c.l.b16 %v189
    %v286 = vpack.c.b16 %v271, %v270
    %v287 = vpack.c.b16 %v273, %v272
    %v288 = vpack.c.b16 %v275, %v274
    %v289 = vpack.c.b16 %v277, %v276
    %v290 = vpack.c.b16 %v279, %v278
    %v291 = vpack.c.b16 %v281, %v280
    %v292 = vpack.c.b16 %v283, %v282
    %v293 = vpack.c.b16 %v285, %v284
    %302 = vmatpush.bf16.msra.mxu0 %v293
    %303 = vmatpush.bf16.msra.mxu0 %v292
    %304 = vmatpush.bf16.msra.mxu0 %v291
    %305 = vmatpush.bf16.msra.mxu0 %v290
    %306 = vmatpush.bf16.msra.mxu0 %v289
    %307 = vmatpush.bf16.msra.mxu0 %v288
    %308 = vmatpush.bf16.msra.mxu0 %v287
    %309 = vmatpush.bf16.msra.mxu0 %v286
    %310 = vmatmul.bf16.gmra.mxu0 %v253
    %v311 = vpop.f32.mrf.mxu0
    %v312 = vadd.f32 0.0, %v311
    %v313 = vpop.f32.mrf.mxu0
    %314 = vdwg.mxu0
    %v315 = vmax.f32 %v312, 0.0
    %v316 = vadd.f32 %v155, %v315
    %s317 = scalar_lea.vmem [#allocation7], 64
    %v318 = vld [vmem:[%s317] sm:$0xf]
    %v319 = vld [vmem:[%s317 + $0x4] sm:$0xf]
    %v320 = vld [vmem:[%s317 + $0x8] sm:$0xf]
    %v321 = vld [vmem:[%s317 + $0xc] sm:$0xf]
    %v322 = vld [vmem:[%s317 + $0x10] sm:$0xf]
    %v323 = vld [vmem:[%s317 + $0x14] sm:$0xf]
    %v324 = vld [vmem:[%s317 + $0x18] sm:$0xf]
    %v325 = vld [vmem:[%s317 + $0x1c] sm:$0xf]
    %v326 = vld [vmem:[%s317 + $0x20] sm:$0xf]
    %v327 = vld [vmem:[%s317 + $0x24] sm:$0xf]
    %v328 = vld [vmem:[%s317 + $0x28] sm:$0xf]
    %v329 = vld [vmem:[%s317 + $0x2c] sm:$0xf]
    %v330 = vld [vmem:[%s317 + $0x30] sm:$0xf]
    %v331 = vld [vmem:[%s317 + $0x34] sm:$0xf]
    %v332 = vld [vmem:[%s317 + $0x38] sm:$0xf]
    %v333 = vld [vmem:[%s317 + $0x3c] sm:$0xf]
    %s334 = scalar_lea.vmem [#allocation8], 64
    %v335 = vld [vmem:[%s334] sm:$0xf]
    %v336 = vld [vmem:[%s334 + $0x4] sm:$0xf]
    %v337 = vld [vmem:[%s334 + $0x8] sm:$0xf]
    %v338 = vld [vmem:[%s334 + $0xc] sm:$0xf]
    %v339 = vld [vmem:[%s334 + $0x10] sm:$0xf]
    %v340 = vld [vmem:[%s334 + $0x14] sm:$0xf]
    %v341 = vld [vmem:[%s334 + $0x18] sm:$0xf]
    %v342 = vld [vmem:[%s334 + $0x1c] sm:$0xf]
    %v343 = vld [vmem:[%s334 + $0x20] sm:$0xf]
    %v344 = vld [vmem:[%s334 + $0x24] sm:$0xf]
    %v345 = vld [vmem:[%s334 + $0x28] sm:$0xf]
    %v346 = vld [vmem:[%s334 + $0x2c] sm:$0xf]
    %v347 = vld [vmem:[%s334 + $0x30] sm:$0xf]
    %v348 = vld [vmem:[%s334 + $0x34] sm:$0xf]
    %v349 = vld [vmem:[%s334 + $0x38] sm:$0xf]
    %v350 = vld [vmem:[%s334 + $0x3c] sm:$0xf]
    %v351 = vpack.c.bf16 %v316, %v316
    %v368 = vunpack.c.l.b16 %v318
    %v369 = vunpack.c.l.b16 %v319
    %v370 = vunpack.c.l.b16 %v320
    %v371 = vunpack.c.l.b16 %v321
    %v372 = vunpack.c.l.b16 %v322
    %v373 = vunpack.c.l.b16 %v323
    %v374 = vunpack.c.l.b16 %v324
    %v375 = vunpack.c.l.b16 %v325
    %v376 = vunpack.c.l.b16 %v326
    %v377 = vunpack.c.l.b16 %v327
    %v378 = vunpack.c.l.b16 %v328
    %v379 = vunpack.c.l.b16 %v329
    %v380 = vunpack.c.l.b16 %v330
    %v381 = vunpack.c.l.b16 %v331
    %v382 = vunpack.c.l.b16 %v332
    %v383 = vunpack.c.l.b16 %v333
    %v384 = vpack.c.b16 %v369, %v368
    %v385 = vpack.c.b16 %v371, %v370
    %v386 = vpack.c.b16 %v373, %v372
    %v387 = vpack.c.b16 %v375, %v374
    %v388 = vpack.c.b16 %v377, %v376
    %v389 = vpack.c.b16 %v379, %v378
    %v390 = vpack.c.b16 %v381, %v380
    %v391 = vpack.c.b16 %v383, %v382
    %400 = vmatpush.bf16.msra.mxu0 %v391
    %401 = vmatpush.bf16.msra.mxu0 %v390
    %402 = vmatpush.bf16.msra.mxu0 %v389
    %403 = vmatpush.bf16.msra.mxu0 %v388
    %404 = vmatpush.bf16.msra.mxu0 %v387
    %405 = vmatpush.bf16.msra.mxu0 %v386
    %406 = vmatpush.bf16.msra.mxu0 %v385
    %407 = vmatpush.bf16.msra.mxu0 %v384
    %408 = vmatmul.bf16.gmra.mxu0 %v351
    %v409 = vpop.f32.mrf.mxu0
    %v410 = vadd.f32 0.0, %v409
    %v411 = vpop.f32.mrf.mxu0
    %412 = vdwg.mxu0
    %v413 = vmax.f32 %v410, 0.0
    %v414 = vpack.c.bf16 %v413, %v413
    %v431 = vunpack.c.l.b16 %v335
    %v432 = vunpack.c.l.b16 %v336
    %v433 = vunpack.c.l.b16 %v337
    %v434 = vunpack.c.l.b16 %v338
    %v435 = vunpack.c.l.b16 %v339
    %v436 = vunpack.c.l.b16 %v340
    %v437 = vunpack.c.l.b16 %v341
    %v438 = vunpack.c.l.b16 %v342
    %v439 = vunpack.c.l.b16 %v343
    %v440 = vunpack.c.l.b16 %v344
    %v441 = vunpack.c.l.b16 %v345
    %v442 = vunpack.c.l.b16 %v346
    %v443 = vunpack.c.l.b16 %v347
    %v444 = vunpack.c.l.b16 %v348
    %v445 = vunpack.c.l.b16 %v349
    %v446 = vunpack.c.l.b16 %v350
    %v447 = vpack.c.b16 %v432, %v431
    %v448 = vpack.c.b16 %v434, %v433
    %v449 = vpack.c.b16 %v436, %v435
    %v450 = vpack.c.b16 %v438, %v437
    %v451 = vpack.c.b16 %v440, %v439
    %v452 = vpack.c.b16 %v442, %v441
    %v453 = vpack.c.b16 %v444, %v443
    %v454 = vpack.c.b16 %v446, %v445
    %463 = vmatpush.bf16.msra.mxu0 %v454
    %464 = vmatpush.bf16.msra.mxu0 %v453
    %465 = vmatpush.bf16.msra.mxu0 %v452
    %466 = vmatpush.bf16.msra.mxu0 %v451
    %467 = vmatpush.bf16.msra.mxu0 %v450
    %468 = vmatpush.bf16.msra.mxu0 %v449
    %469 = vmatpush.bf16.msra.mxu0 %v448
    %470 = vmatpush.bf16.msra.mxu0 %v447
    %471 = vmatmul.bf16.gmra.mxu0 %v414
    %v472 = vpop.f32.mrf.mxu0
    %v473 = vadd.f32 0.0, %v472
    %v474 = vpop.f32.mrf.mxu0
    %475 = vdwg.mxu0
    %v476 = vmax.f32 %v473, 0.0
    %v477 = vadd.f32 %v316, %v476
    %478 = vst [vmem:[#allocation10] sm:$0xff] %v477
    // Predicated region
    $region34: #{tpu_custom_call.1} parent=1 // pred_check
      _
    $region35: #{tpu_custom_call.1} parent=1 // pred_check_branch
      %480 = sbr.rel (0) target = $region37
    $region36: #{tpu_custom_call.1} parent=1 // pred_region
      %482 = vsyncadd [#allocation4], 0
      %s484 = sshll.u32 [#allocation10], 4
      %s485 = int_to_ptr.vmem [resolvable:$true] %s484
      %s486 = sshll.u32 %s4, 4
      %s487 = int_to_ptr.hbm [resolvable:$true] %s486
      %489 = dma.vmem_to_hbm [thread:$0]  %s485, 128, %s487, [#allocation4]
    $region37: #{tpu_custom_call.1} parent=1 // pred_fallthru
      _
    // Predicated region
    $region38: #{tpu_custom_call.1} parent=1 // pred_check
      _
    $region39: #{tpu_custom_call.1} parent=1 // pred_check_branch
      %491 = sbr.rel (0) target = $region41
    $region40: #{tpu_custom_call.1} parent=1 // pred_region
      %493 = dma.done [#allocation4], 128
    $region41: #{tpu_custom_call.1} parent=1 // pred_fallthru
      _
    %494 = vsyncpa [#allocation3], 1
    %495 = vsyncpa [#allocation6], 1
    %496 = vsyncpa [#allocation9], 1
    %497 = vsyncpa [#allocation4], 1

</llo_original>
